<compile_context>
chip_gen: v7x
topology: tpu7x:2x2x1
jax: 0.10.0
libtpu: 0.0.40
codegen_flags: <defaults>
</compile_context>

<pallas_src>
import functools
import math

import jax
import jax.numpy as jnp
from jax.experimental import pallas as pl
from jax.experimental.pallas import tpu as pltpu


def _round_up(x, m):
    return ((x + m - 1) // m) * m


def _cdiv(a, b):
    return -(-a // b)


def _bucket_bounds(t_rel, max_rel, gap):
    """Inclusive [lo, hi] range of distances d = k - q that map to relative index t_rel.

    t_rel = sign(d) * min(|d| // gap, max_rel)  reproduces both the gap==1 clamp and the
    gap!=1 accumulation loop of the PyTorch module exactly.
    """
    big = 1 << 30
    if max_rel == 0:
        return -big, big
    if t_rel == -max_rel:
        lo = -big
    elif t_rel <= 0:
        lo = (t_rel - 1) * gap + 1
    else:
        lo = t_rel * gap
    if t_rel == max_rel:
        hi = big
    elif t_rel >= 0:
        hi = (t_rel + 1) * gap - 1
    else:
        hi = t_rel * gap
    return lo, hi


def _pick_lane_group(num_units):
    """Gk = #k positions packed into one lane group; W_grp = group lane width (multiple of 128)."""
    lcm = num_units * 128 // math.gcd(num_units, 128)
    if lcm <= 1024:
        return lcm // num_units, lcm                    # zero lane padding (common case)
    # TODO(synk): odd num_units fall back to a lane-padded group (<=25% padded lanes).
    gk = max(1, _cdiv(512, num_units))
    return gk, _round_up(gk * num_units, 128)


def _rel_pos_kernel(lo_ref, hi_ref, w_ref, out_ref, *,
                    tile_q, groups_per_blk, gk, w_grp, compute_dtype):
    qi = pl.program_id(0)
    ki = pl.program_id(1)

    # Global query index per row of this tile (hoisted out of the group loop).
    q_glob = qi * tile_q + jax.lax.broadcasted_iota(jnp.int32, (tile_q, 1), 0)
    lo = lo_ref[...]      # (1, K_pad) int32 bucket lower bounds (in-group k offset folded in)
    hi = hi_ref[...]      # (1, K_pad) int32 bucket upper bounds
    w = w_ref[...]        # (K_pad, W_grp) block-diagonal copies of the embeddings table

    for g in range(groups_per_blk):                     # bounded static unroll (<= 16)
        # First k position covered by this lane group (scalar).
        k_base = (ki * groups_per_blk + g) * gk
        d0 = k_base - q_glob                            # (tile_q, 1)
        # Exact 0/1 one-hot over (k-offset, relative-index) buckets: 2 cmps + and + select.
        hit = (d0 >= lo) & (d0 <= hi)
        one_hot = jnp.where(hit, jnp.float32(1), jnp.float32(0)).astype(compute_dtype)
        # Gather = one-hot @ block-diag(table): rides the MXU; output is a lane-dense
        # (tile_q, W_grp) slab with W_grp a multiple of 128 -> unmasked aligned store.
        acc = jnp.dot(one_hot, w, preferred_element_type=jnp.float32,
                      precision=jax.lax.Precision.HIGHEST)
        out_ref[:, g * w_grp:(g + 1) * w_grp] = acc.astype(out_ref.dtype)


def relative_position_forward(embeddings_table, length_q, length_k,
                              max_relative_position, gap=1, out_dtype=None):
    """Pallas equivalent of RelativePosition.forward(length_q, length_k)."""
    T, U = embeddings_table.shape
    assert T == 2 * max_relative_position + 1
    assert gap >= 1
    if out_dtype is None:
        out_dtype = embeddings_table.dtype
    out_dtype = jnp.dtype(out_dtype)
    itemsize = out_dtype.itemsize
    # <=16-bit consumer: run the whole gather in bf16 (gather commutes with rounding, so the
    # single-pass bf16 MXU matmul still matches bf16(f32 reference) exactly) and halve HBM stores.
    compute_dtype = jnp.float32 if itemsize >= 4 else jnp.bfloat16

    # ---- lane grouping: Gk k positions per 128-lane-aligned store group ----
    gk, w_grp = _pick_lane_group(U)
    n_grp = _cdiv(length_k, gk)

    # ---- k tiling: bounded in-kernel unroll, lane-dense blocks, balanced to minimize padding ----
    gpb_cap = max(1, min(16, 2048 // w_grp))
    num_kb = _cdiv(n_grp, gpb_cap)
    gpb = _cdiv(n_grp, num_kb)
    bw = gpb * w_grp

    # ---- q tiling: size the double-buffered output block from this chip's VMEM ----
    try:
        vmem_cap = int(pltpu.get_tpu_info().vmem_capacity_bytes)
    except Exception:
        vmem_cap = 64 * 1024 * 1024
    target_block_bytes = max(1 << 20, min(16 << 20, vmem_cap // 8))
    q_align = max(8, 32 // itemsize)                    # 8 rows for f32, 16 for bf16 packing
    lq_r = _round_up(length_q, q_align)
    tile_q_cap = max(q_align,
                     min(2048, (target_block_bytes // (bw * itemsize)) // q_align * q_align))
    num_q = _cdiv(lq_r, tile_q_cap)
    tile_q = _round_up(_cdiv(lq_r, num_q), q_align)     # balanced: minimal last-tile waste

    # Guarantee >=2 grid steps on non-trivial problems so both v7x TensorCores get work.
    if num_q * num_kb == 1 and tile_q * bw * itemsize >= (1 << 20):
        if tile_q >= 2 * q_align:
            num_q = 2
            tile_q = _round_up(_cdiv(lq_r, num_q), q_align)
        elif gpb >= 2:
            num_kb, gpb = 2, _cdiv(n_grp, 2)
            bw = gpb * w_grp
    lq_pad = num_q * tile_q

    # ---- tiny resident operands: distance buckets + block-diagonal table ----
    k_dim = gk * T
    k_pad = _round_up(k_dim, 8)
    big = 1 << 30
    lo_list, hi_list = [], []
    for c in range(k_pad):
        if c < k_dim:
            j, t = divmod(c, T)
            lo, hi = _bucket_bounds(t - max_relative_position, max_relative_position, gap)
            lo_list.append(lo - j)                      # fold in-group k offset into the bucket
            hi_list.append(hi - j)
        else:
            lo_list.append(big)                         # padded columns never fire
            hi_list.append(-big)
    lo_arr = jnp.asarray(lo_list, dtype=jnp.int32).reshape(1, k_pad)
    hi_arr = jnp.asarray(hi_list, dtype=jnp.int32).reshape(1, k_pad)

    table = embeddings_table.astype(compute_dtype)
    w = jnp.zeros((k_pad, w_grp), dtype=compute_dtype)
    w = w.at[:k_dim, :gk * U].set(jnp.kron(jnp.eye(gk, dtype=compute_dtype), table))

    kernel = functools.partial(
        _rel_pos_kernel,
        tile_q=tile_q, groups_per_blk=gpb, gk=gk, w_grp=w_grp,
        compute_dtype=compute_dtype,
    )

    block_bytes = tile_q * bw * itemsize
    vmem_limit = int(min(max(vmem_cap - (16 << 20), 32 << 20),
                         2 * block_bytes + (16 << 20)))

    flat = pl.pallas_call(
        kernel,
        out_shape=jax.ShapeDtypeStruct((lq_pad, num_kb * bw), out_dtype),
        grid=(num_q, num_kb),
        in_specs=[
            pl.BlockSpec((1, k_pad), lambda qi, ki: (0, 0)),        # lo  (resident)
            pl.BlockSpec((1, k_pad), lambda qi, ki: (0, 0)),        # hi  (resident)
            pl.BlockSpec((k_pad, w_grp), lambda qi, ki: (0, 0)),    # block-diag table (resident)
        ],
        out_specs=pl.BlockSpec((tile_q, bw), lambda qi, ki: (qi, ki)),
        compiler_params=pltpu.CompilerParams(
            dimension_semantics=("parallel", "parallel"),
            vmem_limit_bytes=vmem_limit,
        ),
    )(lo_arr, hi_arr, w)

    # glue: drop row / lane-group padding and reshape to the PyTorch layout (Lq, Lk, U).
    emb = flat[:length_q].reshape(length_q, num_kb * gpb, w_grp)[:, :, :gk * U]
    return emb.reshape(length_q, num_kb * gpb * gk, U)[:, :length_k]


def _reference(embeddings_table, length_q, length_k, max_rel, gap):
    """Pure-JAX reference mirroring the PyTorch forward exactly."""
    range_q = jnp.arange(length_q)
    range_k = jnp.arange(length_k)
    dist = range_k[None, :] - range_q[:, None]
    if gap == 1:
        clipped = jnp.clip(dist, -max_rel, max_rel)
    else:
        clipped = jnp.zeros_like(dist)
        for i in range(1, max_rel + 1):
            tmp = jnp.clip(dist, -i * gap, i * gap)
            tmp = jnp.where(jnp.abs(tmp) != i * gap, 0, tmp) // (i * gap)
            clipped = clipped + tmp
    final_mat = clipped + max_rel
    return embeddings_table[final_mat]


if __name__ == "__main__":
    num_units = 32
    max_relative_position = 4
    gap = 2
    length_q = 8
    length_k = 8
    T = 2 * max_relative_position + 1

    # Deterministic xavier_uniform_-style init of the embeddings table (shape (T, num_units)).
    key = jax.random.PRNGKey(0)
    bound = math.sqrt(6.0 / (T + num_units))
    embeddings_table = jax.random.uniform(
        key, (T, num_units), dtype=jnp.float32, minval=-bound, maxval=bound
    )

    out = relative_position_forward(
        embeddings_table, length_q, length_k, max_relative_position, gap=gap
    )
    out = jax.block_until_ready(out)
    ref = _reference(embeddings_table, length_q, length_k, max_relative_position, gap)
    assert out.shape == (length_q, length_k, num_units)
    assert jnp.allclose(out, ref, atol=1e-6), "mismatch vs reference (gap=2)"

    # Extra coverage: gap==1, rectangular lengths, row/k padding, and the bf16 output path.
    for (lq, lk, mrp, g, odt) in [(8, 16, 4, 1, jnp.float32),
                                  (5, 7, 2, 3, jnp.float32),
                                  (12, 9, 3, 2, jnp.bfloat16)]:
        tt = 2 * mrp + 1
        tbl = jax.random.uniform(jax.random.PRNGKey(1), (tt, num_units),
                                 dtype=jnp.float32, minval=-1.0, maxval=1.0)
        o = jax.block_until_ready(
            relative_position_forward(tbl, lq, lk, mrp, gap=g, out_dtype=odt))
        r = _reference(tbl, lq, lk, mrp, g)
        assert o.shape == (lq, lk, num_units)
        tol = 1e-6 if odt is jnp.float32 else 4e-3
        assert jnp.allclose(o.astype(jnp.float32),
                            r.astype(odt).astype(jnp.float32), atol=tol), \
            f"mismatch vs reference (lq={lq},lk={lk},mrp={mrp},gap={g},dtype={odt})"

    print("KERNEL_OK")
</pallas_src>

<mosaic_0001>
module attributes {stable_mosaic.version = 11 : i64} {
  func.func @_rel_pos_kernel(%arg0: i32, %arg1: i32, %arg2: memref<1x40xi32, #tpu.memory_space<vmem>>, %arg3: memref<1x40xi32, #tpu.memory_space<vmem>>, %arg4: memref<40x128xf32, #tpu.memory_space<vmem>>, %arg5: memref<8x256xf32, #tpu.memory_space<vmem>>) attributes {dimension_semantics = [#tpu.dimension_semantics<parallel>, #tpu.dimension_semantics<parallel>], iteration_bounds = array<i64: 1, 1>, scalar_prefetch = 0 : i64, scratch_operands = 0 : i64, tpu.core_type = #tpu.core_type<tc>, window_params = [{pipeline_mode = #tpu.pipeline_mode<synchronous>, transform_indices = @transform_0, window_bounds = array<i64: 1, 40>}, {pipeline_mode = #tpu.pipeline_mode<synchronous>, transform_indices = @transform_1, window_bounds = array<i64: 1, 40>}, {pipeline_mode = #tpu.pipeline_mode<synchronous>, transform_indices = @transform_2, window_bounds = array<i64: 40, 128>}, {transform_indices = @transform_3, window_bounds = array<i64: 8, 256>}]} {
    %c8_i32 = arith.constant 8 : i32
    %0 = arith.muli %arg0, %c8_i32 : i32
    %1 = tpu.iota {dimensions = array<i32: 0>} : vector<8x1xi32>
    %2 = vector.broadcast %0 : i32 to vector<8x1xi32>
    %3 = arith.addi %2, %1 : vector<8x1xi32>
    %c0 = arith.constant 0 : index
    %c0_0 = arith.constant 0 : index
    %4 = vector.load %arg2[%c0, %c0_0] : memref<1x40xi32, #tpu.memory_space<vmem>>, vector<1x40xi32>
    %c0_1 = arith.constant 0 : index
    %c0_2 = arith.constant 0 : index
    %5 = vector.load %arg3[%c0_1, %c0_2] : memref<1x40xi32, #tpu.memory_space<vmem>>, vector<1x40xi32>
    %c0_3 = arith.constant 0 : index
    %c0_4 = arith.constant 0 : index
    %6 = vector.load %arg4[%c0_3, %c0_4] : memref<40x128xf32, #tpu.memory_space<vmem>>, vector<40x128xf32>
    %c2_i32 = arith.constant 2 : i32
    %7 = arith.muli %arg1, %c2_i32 : i32
    %c0_i32 = arith.constant 0 : i32
    %8 = arith.addi %7, %c0_i32 : i32
    %c4_i32 = arith.constant 4 : i32
    %9 = arith.muli %8, %c4_i32 : i32
    %10 = vector.broadcast %9 : i32 to vector<8x1xi32>
    %11 = arith.subi %10, %3 : vector<8x1xi32>
    %12 = vector.broadcast %11 : vector<8x1xi32> to vector<8x40xi32>
    %13 = vector.broadcast %4 : vector<1x40xi32> to vector<8x40xi32>
    %14 = arith.cmpi sge, %12, %13 : vector<8x40xi32>
    %15 = vector.broadcast %11 : vector<8x1xi32> to vector<8x40xi32>
    %16 = vector.broadcast %5 : vector<1x40xi32> to vector<8x40xi32>
    %17 = arith.cmpi sle, %15, %16 : vector<8x40xi32>
    %18 = arith.andi %14, %17 : vector<8x40xi1>
    %cst = arith.constant 1.000000e+00 : f32
    %cst_5 = arith.constant 0.000000e+00 : f32
    %19 = vector.broadcast %cst : f32 to vector<8x40xf32>
    %20 = vector.broadcast %cst_5 : f32 to vector<8x40xf32>
    %21 = arith.select %18, %19, %20 : vector<8x40xi1>, vector<8x40xf32>
    %cst_6 = arith.constant dense<0.000000e+00> : vector<8x128xf32>
    %22 = tpu.matmul %21, %6, %cst_6 {dimension_numbers = #tpu.dot_dimension_numbers<[1], [0], [0], [1], [0, 0, 1, 1], [], []>, precision = #tpu.contract_precision<fp32>} : vector<8x40xf32>, vector<40x128xf32>, vector<8x128xf32> -> vector<8x128xf32>
    %c0_7 = arith.constant 0 : index
    %c0_8 = arith.constant 0 : index
    %23 = vector.load %arg5[%c0_7, %c0_8] : memref<8x256xf32, #tpu.memory_space<vmem>>, vector<8x128xf32>
    tpu.vector_store %arg5[%c0_7, %c0_8], %22 {strides = array<i32>} : memref<8x256xf32, #tpu.memory_space<vmem>>, vector<8x128xf32>,
    %c2_i32_9 = arith.constant 2 : i32
    %24 = arith.muli %arg1, %c2_i32_9 : i32
    %c1_i32 = arith.constant 1 : i32
    %25 = arith.addi %24, %c1_i32 : i32
    %c4_i32_10 = arith.constant 4 : i32
    %26 = arith.muli %25, %c4_i32_10 : i32
    %27 = vector.broadcast %26 : i32 to vector<8x1xi32>
    %28 = arith.subi %27, %3 : vector<8x1xi32>
    %29 = vector.broadcast %28 : vector<8x1xi32> to vector<8x40xi32>
    %30 = vector.broadcast %4 : vector<1x40xi32> to vector<8x40xi32>
    %31 = arith.cmpi sge, %29, %30 : vector<8x40xi32>
    %32 = vector.broadcast %28 : vector<8x1xi32> to vector<8x40xi32>
    %33 = vector.broadcast %5 : vector<1x40xi32> to vector<8x40xi32>
    %34 = arith.cmpi sle, %32, %33 : vector<8x40xi32>
    %35 = arith.andi %31, %34 : vector<8x40xi1>
    %cst_11 = arith.constant 1.000000e+00 : f32
    %cst_12 = arith.constant 0.000000e+00 : f32
    %36 = vector.broadcast %cst_11 : f32 to vector<8x40xf32>
    %37 = vector.broadcast %cst_12 : f32 to vector<8x40xf32>
    %38 = arith.select %35, %36, %37 : vector<8x40xi1>, vector<8x40xf32>
    %cst_13 = arith.constant dense<0.000000e+00> : vector<8x128xf32>
    %39 = tpu.matmul %38, %6, %cst_13 {dimension_numbers = #tpu.dot_dimension_numbers<[1], [0], [0], [1], [0, 0, 1, 1], [], []>, precision = #tpu.contract_precision<fp32>} : vector<8x40xf32>, vector<40x128xf32>, vector<8x128xf32> -> vector<8x128xf32>
    %c0_14 = arith.constant 0 : index
    %c128 = arith.constant 128 : index
    %40 = vector.load %arg5[%c0_14, %c128] : memref<8x256xf32, #tpu.memory_space<vmem>>, vector<8x128xf32>
    tpu.vector_store %arg5[%c0_14, %c128], %39 {strides = array<i32>} : memref<8x256xf32, #tpu.memory_space<vmem>>, vector<8x128xf32>,
    return
  }
  func.func @transform_0(%arg0: i32, %arg1: i32) -> (i32, i32) {
    %c0_i32 = arith.constant 0 : i32
    %c0_i32_0 = arith.constant 0 : i32
    %c0_i32_1 = arith.constant 0 : i32
    return %c0_i32, %c0_i32_0 : i32, i32
  }
  func.func @transform_1(%arg0: i32, %arg1: i32) -> (i32, i32) {
    %c0_i32 = arith.constant 0 : i32
    %c0_i32_0 = arith.constant 0 : i32
    %c0_i32_1 = arith.constant 0 : i32
    return %c0_i32, %c0_i32_0 : i32, i32
  }
  func.func @transform_2(%arg0: i32, %arg1: i32) -> (i32, i32) {
    %c0_i32 = arith.constant 0 : i32
    %c0_i32_0 = arith.constant 0 : i32
    %c0_i32_1 = arith.constant 0 : i32
    return %c0_i32, %c0_i32_0 : i32, i32
  }
  func.func @transform_3(%arg0: i32, %arg1: i32) -> (i32, i32) {
    %c0_i32 = arith.constant 0 : i32
    return %arg0, %arg1 : i32, i32
  }
}

</mosaic_0001>

<llo_original>
// kernel: tpu_custom_call.1
$region0: #{tpu_custom_call.1}
  #allocation0 [shape = 'u32[]', space=smem, size = 0x4, offset = 0x4, fixed_abs, tag = 'smem constant byte address 0x4 - core index']
  #allocation1 [shape = 'u32[144,128]{1,0:T(1,128)}', space=vmem, size = 0x12000, scoped, tag = 'internal scratch']
  %s0 = inlined_call_operand.hbm [shape: s32[1,40], index: 0, kind: input, shape index: {}]
  %s1 = inlined_call_operand.vmem [shape: s32[1,40], index: 1, kind: input, shape index: {}]
  %s2 = inlined_call_operand.hbm [shape: f32[40,128], index: 2, kind: input, shape index: {}]
  %s3 = inlined_call_operand.hbm [shape: f32[8,256], index: 3, kind: output, shape index: {}]
  %s4 = sld [smem:[#allocation0]]
  $region30: #{tpu_custom_call.1} parent=0
    _
  %s6 = ssub.s32 1, %s4
  %s7 = scalar_select 0, %s6, %s4
  $region1: #{tpu_custom_call.1} parent=0
    #allocation2 [shape = 'u8[512]{0}', space=vmem, size = 0x400, scoped, tag = 'input window, operand 0, single buffered']
    #allocation3 [shape = 's32[1]{0}', space=sflag, size = 0x4, scoped, tag = 'scoped memory for tpu_custom_call.1']
    #allocation4 [shape = 's32[1]{0}', space=sflag, size = 0x4, scoped, tag = 'scoped memory for tpu_custom_call.1']
    #allocation5 [shape = 'u8[20480]{0}', space=vmem, size = 0x5000, scoped, tag = 'input window, operand 2, single buffered']
    #allocation6 [shape = 's32[1]{0}', space=sflag, size = 0x4, scoped, tag = 'scoped memory for tpu_custom_call.1']
    #allocation7 [shape = 'u8[8192]{0}', space=vmem, size = 0x2000, scoped, tag = 'output window, operand 0, single buffered']
    %8 = vsyncpa [#allocation3], 0
    %9 = vsyncpa [#allocation6], 0
    %10 = vsyncpa [#allocation4], 0
    // Predicated region
    $region2: #{tpu_custom_call.1} parent=1 // pred_check
      _
    $region3: #{tpu_custom_call.1} parent=1 // pred_check_branch
      %12 = sbr.rel (0) target = $region5
    $region4: #{tpu_custom_call.1} parent=1 // pred_region
      %s14 = ssub.s32 16, 16
      %15 = vsyncadd [#allocation3], %s14
      %s17 = sshll.u32 [#allocation2], 4
      %s18 = int_to_ptr.vmem [resolvable:$true] %s17
      %20 = dma.hbm_to_vmem [thread:$0]  %s0, 16, %s18, [#allocation3]
    $region5: #{tpu_custom_call.1} parent=1 // pred_fallthru
      _
    // Predicated region
    $region6: #{tpu_custom_call.1} parent=1 // pred_check
      _
    $region7: #{tpu_custom_call.1} parent=1 // pred_check_branch
      %22 = sbr.rel (0) target = $region9
    $region8: #{tpu_custom_call.1} parent=1 // pred_region
      _
    $region9: #{tpu_custom_call.1} parent=1 // pred_fallthru
      _
    // Predicated region
    $region10: #{tpu_custom_call.1} parent=1 // pred_check
      _
    $region11: #{tpu_custom_call.1} parent=1 // pred_check_branch
      %24 = sbr.rel (0) target = $region13
    $region12: #{tpu_custom_call.1} parent=1 // pred_region
      %s26 = ssub.s32 640, 640
      %27 = vsyncadd [#allocation6], %s26
      %s28 = sshll.u32 [#allocation5], 4
      %s29 = int_to_ptr.vmem [resolvable:$true] %s28
      %34 = dma.hbm_to_vmem [thread:$0]  %s2, 640, %s29, [#allocation6], 128, 128, 8
    $region13: #{tpu_custom_call.1} parent=1 // pred_fallthru
      _
    // Predicated region
    $region14: #{tpu_custom_call.1} parent=1 // pred_check
      _
    $region15: #{tpu_custom_call.1} parent=1 // pred_check_branch
      %36 = sbr.rel (0) target = $region17
    $region16: #{tpu_custom_call.1} parent=1 // pred_region
      %37 = dma.done [#allocation3], 16
    $region17: #{tpu_custom_call.1} parent=1 // pred_fallthru
      _
    // Predicated region
    $region18: #{tpu_custom_call.1} parent=1 // pred_check
      _
    $region19: #{tpu_custom_call.1} parent=1 // pred_check_branch
      %39 = sbr.rel (0) target = $region21
    $region20: #{tpu_custom_call.1} parent=1 // pred_region
      %40 = dma.done [#allocation6], 640
    $region21: #{tpu_custom_call.1} parent=1 // pred_fallthru
      _
    %s41 = smul.u32 0, 8
    %v42 = vlaneseq
    %v43 = vshrl.u32 %v42, 7
    %v44 = vstv %s41
    %v45 = vadd.s32 %v44, %v43
    %v46 = vld [vmem:[#allocation2] sm:$0x1]
    %v47 = vld [vmem:[%s1] sm:$0x1]
    %v48 = vld [vmem:[#allocation5] sm:$0xff]
    %v49 = vld [vmem:[#allocation5 + $0x8] sm:$0xff]
    %v50 = vld [vmem:[#allocation5 + $0x10] sm:$0xff]
    %v51 = vld [vmem:[#allocation5 + $0x18] sm:$0xff]
    %v52 = vld [vmem:[#allocation5 + $0x20] sm:$0xff]
    %s53 = smul.u32 0, 8
    %v54 = vstv %s53
    %v55 = vsub.s32 %v54, %v45
    %v56 = vlaneseq
    %v57 = vshrl.u32 %v56, 7
    %v58 = vsub.s32 0, %v57
    %v59 = vrot.slane %v46, %v58
    %vm60 = vcmp.ge.s32.totalorder %v55, %v59
    %v61 = vlaneseq
    %v62 = vshrl.u32 %v61, 7
    %v63 = vsub.s32 0, %v62
    %v64 = vrot.slane %v47, %v63
    %vm65 = vcmp.le.s32.totalorder %v55, %v64
    %vm66 = vmand %vm60, %vm65
    %v67 = vsel %vm66, 1.0, 0.0
    %vm68 = vcmask 326656
    %v70 = vsel %vm68, %v67, 0
    %72 = vmatprep.subr.mxu0 0.0
    %v73 = vand.u32 %v48, 4294901760
    %74 = vmatpush1.msra.mxu0 %v73
    %75 = vmatprep.subr.mxu0 0.0
    %v76 = vand.u32 %v49, 4294901760
    %77 = vmatpush1.msra.mxu0 %v76
    %78 = vmatprep.subr.mxu0 0.0
    %v79 = vand.u32 %v50, 4294901760
    %80 = vmatpush1.msra.mxu0 %v79
    %81 = vmatprep.subr.mxu0 0.0
    %v82 = vand.u32 %v51, 4294901760
    %83 = vmatpush1.msra.mxu0 %v82
    %84 = vmatprep.subr.mxu0 0.0
    %v85 = vand.u32 %v52, 4294901760
    %86 = vmatpush1.msra.mxu0 %v85
    %87 = vmatprep.subr.mxu0 0.0
    %88 = vmatpush1.msra.mxu0 0.0
    %89 = vmatprep.subr.mxu0 0.0
    %90 = vmatpush1.msra.mxu0 0.0
    %91 = vmatprep.subr.mxu0 0.0
    %92 = vmatpush1.msra.mxu0 0.0
    %93 = vmatprep.subr.mxu0 0.0
    %94 = vmatpush1.msra.mxu0 0.0
    %95 = vmatprep.subr.mxu0 0.0
    %96 = vmatpush1.msra.mxu0 0.0
    %97 = vmatprep.subr.mxu0 0.0
    %98 = vmatpush1.msra.mxu0 0.0
    %99 = vmatprep.subr.mxu0 0.0
    %100 = vmatpush1.msra.mxu0 0.0
    %101 = vmatprep.subr.mxu0 0.0
    %102 = vmatpush1.msra.mxu0 0.0
    %103 = vmatprep.subr.mxu0 0.0
    %104 = vmatpush1.msra.mxu0 0.0
    %105 = vmatprep.subr.mxu0 0.0
    %106 = vmatpush1.msra.mxu0 0.0
    %107 = vmatprep.subr.mxu0 0.0
    %108 = vmatpush1.msra.mxu0 0.0
    %109 = vmatprep.subr.mxu0 0.0
    %110 = vmatpush1.msra.mxu0 0.0
    %111 = vmatprep.subr.mxu0 0.0
    %112 = vmatpush1.msra.mxu0 0.0
    %113 = vmatprep.subr.mxu0 0.0
    %114 = vmatpush1.msra.mxu0 0.0
    %115 = vmatprep.subr.mxu0 0.0
    %116 = vmatpush1.msra.mxu0 0.0
    %117 = vmatprep.subr.mxu0 0.0
    %118 = vmatpush1.msra.mxu0 0.0
    %119 = vmatprep.subr.mxu0 0.0
    %120 = vmatpush1.msra.mxu0 0.0
    %121 = vmatprep.subr.mxu0 0.0
    %122 = vmatpush1.msra.mxu0 0.0
    %123 = vmatprep.subr.mxu0 0.0
    %124 = vmatpush1.msra.mxu0 0.0
    %125 = vmatprep.subr.mxu0 0.0
    %126 = vmatpush1.msra.mxu0 0.0
    %127 = vmatprep.subr.mxu0 0.0
    %128 = vmatpush1.msra.mxu0 0.0
    %129 = vmatprep.subr.mxu0 0.0
    %130 = vmatpush1.msra.mxu0 0.0
    %131 = vmatprep.subr.mxu0 0.0
    %132 = vmatpush1.msra.mxu0 0.0
    %133 = vmatprep.subr.mxu0 0.0
    %134 = vmatpush1.msra.mxu0 0.0
    %135 = vmatprep.subr.mxu0 0.0
    %136 = vmatpush1.msra.mxu0 0.0
    %137 = vmatprep.subr.mxu0 0.0
    %138 = vmatpush1.msra.mxu0 0.0
    %139 = vmatprep.subr.mxu0 0.0
    %140 = vmatpush1.msra.mxu0 0.0
    %141 = vmatprep.mubr.f32.mxu0 0.0
    %v142 = vand.u32 %v70, 4294901760
    %v143 = vsub.f32 %v70, %v142
    %v144 = vand.u32 %v143, 4294901760
    %v145 = vsub.f32 %v143, %v144
    %v146 = vand.u32 %v145, 4294901760
    %147 = vmatmul.mubr.f32.gmra.mrb[0].mxu0 %v146
    %v148 = vpop.f32.mrb[0].mxu0
    %v149 = vadd.f32 0.0, %v148
    %v150 = vpop.f32.mrb[0].mxu0
    %151 = vdwg.mxu0
    %152 = vmatprep.subr.mxu0 0.0
    %v153 = vand.u32 %v48, 4294901760
    %v154 = vsub.f32 %v48, %v153
    %v155 = vand.u32 %v154, 4294901760
    %v156 = vsub.f32 %v154, %v155
    %v157 = vand.u32 %v156, 4294901760
    %158 = vmatpush1.msra.mxu0 %v157
    %159 = vmatprep.subr.mxu0 0.0
    %v160 = vand.u32 %v49, 4294901760
    %v161 = vsub.f32 %v49, %v160
    %v162 = vand.u32 %v161, 4294901760
    %v163 = vsub.f32 %v161, %v162
    %v164 = vand.u32 %v163, 4294901760
    %165 = vmatpush1.msra.mxu0 %v164
    %166 = vmatprep.subr.mxu0 0.0
    %v167 = vand.u32 %v50, 4294901760
    %v168 = vsub.f32 %v50, %v167
    %v169 = vand.u32 %v168, 4294901760
    %v170 = vsub.f32 %v168, %v169
    %v171 = vand.u32 %v170, 4294901760
    %172 = vmatpush1.msra.mxu0 %v171
    %173 = vmatprep.subr.mxu0 0.0
    %v174 = vand.u32 %v51, 4294901760
    %v175 = vsub.f32 %v51, %v174
    %v176 = vand.u32 %v175, 4294901760
    %v177 = vsub.f32 %v175, %v176
    %v178 = vand.u32 %v177, 4294901760
    %179 = vmatpush1.msra.mxu0 %v178
    %180 = vmatprep.subr.mxu0 0.0
    %v181 = vand.u32 %v52, 4294901760
    %v182 = vsub.f32 %v52, %v181
    %v183 = vand.u32 %v182, 4294901760
    %v184 = vsub.f32 %v182, %v183
    %v185 = vand.u32 %v184, 4294901760
    %186 = vmatpush1.msra.mxu0 %v185
    %187 = vmatprep.subr.mxu0 0.0
    %188 = vmatpush1.msra.mxu0 0.0
    %189 = vmatprep.subr.mxu0 0.0
    %190 = vmatpush1.msra.mxu0 0.0
    %191 = vmatprep.subr.mxu0 0.0
    %192 = vmatpush1.msra.mxu0 0.0
    %193 = vmatprep.subr.mxu0 0.0
    %194 = vmatpush1.msra.mxu0 0.0
    %195 = vmatprep.subr.mxu0 0.0
    %196 = vmatpush1.msra.mxu0 0.0
    %197 = vmatprep.subr.mxu0 0.0
    %198 = vmatpush1.msra.mxu0 0.0
    %199 = vmatprep.subr.mxu0 0.0
    %200 = vmatpush1.msra.mxu0 0.0
    %201 = vmatprep.subr.mxu0 0.0
    %202 = vmatpush1.msra.mxu0 0.0
    %203 = vmatprep.subr.mxu0 0.0
    %204 = vmatpush1.msra.mxu0 0.0
    %205 = vmatprep.subr.mxu0 0.0
    %206 = vmatpush1.msra.mxu0 0.0
    %207 = vmatprep.subr.mxu0 0.0
    %208 = vmatpush1.msra.mxu0 0.0
    %209 = vmatprep.subr.mxu0 0.0
    %210 = vmatpush1.msra.mxu0 0.0
    %211 = vmatprep.subr.mxu0 0.0
    %212 = vmatpush1.msra.mxu0 0.0
    %213 = vmatprep.subr.mxu0 0.0
    %214 = vmatpush1.msra.mxu0 0.0
    %215 = vmatprep.subr.mxu0 0.0
    %216 = vmatpush1.msra.mxu0 0.0
    %217 = vmatprep.subr.mxu0 0.0
    %218 = vmatpush1.msra.mxu0 0.0
    %219 = vmatprep.subr.mxu0 0.0
    %220 = vmatpush1.msra.mxu0 0.0
    %221 = vmatprep.subr.mxu0 0.0
    %222 = vmatpush1.msra.mxu0 0.0
    %223 = vmatprep.subr.mxu0 0.0
    %224 = vmatpush1.msra.mxu0 0.0
    %225 = vmatprep.subr.mxu0 0.0
    %226 = vmatpush1.msra.mxu0 0.0
    %227 = vmatprep.subr.mxu0 0.0
    %228 = vmatpush1.msra.mxu0 0.0
    %229 = vmatprep.subr.mxu0 0.0
    %230 = vmatpush1.msra.mxu0 0.0
    %231 = vmatprep.subr.mxu0 0.0
    %232 = vmatpush1.msra.mxu0 0.0
    %233 = vmatprep.subr.mxu0 0.0
    %234 = vmatpush1.msra.mxu0 0.0
    %235 = vmatprep.subr.mxu0 0.0
    %236 = vmatpush1.msra.mxu0 0.0
    %237 = vmatprep.subr.mxu0 0.0
    %238 = vmatpush1.msra.mxu0 0.0
    %239 = vmatprep.subr.mxu0 0.0
    %240 = vmatpush1.msra.mxu0 0.0
    %241 = vmatprep.mubr.f32.mxu0 0.0
    %v242 = vand.u32 %v70, 4294901760
    %243 = vmatmul.mubr.f32.gmra.mrb[0].mxu0 %v242
    %v244 = vpop.f32.mrb[0].mxu0
    %v245 = vadd.f32 %v149, %v244
    %v246 = vpop.f32.mrb[0].mxu0
    %247 = vdwg.mxu0
    %248 = vmatprep.subr.mxu0 0.0
    %v249 = vand.u32 %v48, 4294901760
    %v250 = vsub.f32 %v48, %v249
    %251 = vmatpush1.msra.mxu0 %v250
    %252 = vmatprep.subr.mxu0 0.0
    %v253 = vand.u32 %v49, 4294901760
    %v254 = vsub.f32 %v49, %v253
    %255 = vmatpush1.msra.mxu0 %v254
    %256 = vmatprep.subr.mxu0 0.0
    %v257 = vand.u32 %v50, 4294901760
    %v258 = vsub.f32 %v50, %v257
    %259 = vmatpush1.msra.mxu0 %v258
    %260 = vmatprep.subr.mxu0 0.0
    %v261 = vand.u32 %v51, 4294901760
    %v262 = vsub.f32 %v51, %v261
    %263 = vmatpush1.msra.mxu0 %v262
    %264 = vmatprep.subr.mxu0 0.0
    %v265 = vand.u32 %v52, 4294901760
    %v266 = vsub.f32 %v52, %v265
    %267 = vmatpush1.msra.mxu0 %v266
    %268 = vmatprep.subr.mxu0 0.0
    %269 = vmatpush1.msra.mxu0 0.0
    %270 = vmatprep.subr.mxu0 0.0
    %271 = vmatpush1.msra.mxu0 0.0
    %272 = vmatprep.subr.mxu0 0.0
    %273 = vmatpush1.msra.mxu0 0.0
    %274 = vmatprep.subr.mxu0 0.0
    %275 = vmatpush1.msra.mxu0 0.0
    %276 = vmatprep.subr.mxu0 0.0
    %277 = vmatpush1.msra.mxu0 0.0
    %278 = vmatprep.subr.mxu0 0.0
    %279 = vmatpush1.msra.mxu0 0.0
    %280 = vmatprep.subr.mxu0 0.0
    %281 = vmatpush1.msra.mxu0 0.0
    %282 = vmatprep.subr.mxu0 0.0
    %283 = vmatpush1.msra.mxu0 0.0
    %284 = vmatprep.subr.mxu0 0.0
    %285 = vmatpush1.msra.mxu0 0.0
    %286 = vmatprep.subr.mxu0 0.0
    %287 = vmatpush1.msra.mxu0 0.0
    %288 = vmatprep.subr.mxu0 0.0
    %289 = vmatpush1.msra.mxu0 0.0
    %290 = vmatprep.subr.mxu0 0.0
    %291 = vmatpush1.msra.mxu0 0.0
    %292 = vmatprep.subr.mxu0 0.0
    %293 = vmatpush1.msra.mxu0 0.0
    %294 = vmatprep.subr.mxu0 0.0
    %295 = vmatpush1.msra.mxu0 0.0
    %296 = vmatprep.subr.mxu0 0.0
    %297 = vmatpush1.msra.mxu0 0.0
    %298 = vmatprep.subr.mxu0 0.0
    %299 = vmatpush1.msra.mxu0 0.0
    %300 = vmatprep.subr.mxu0 0.0
    %301 = vmatpush1.msra.mxu0 0.0
    %302 = vmatprep.subr.mxu0 0.0
    %303 = vmatpush1.msra.mxu0 0.0
    %304 = vmatprep.subr.mxu0 0.0
    %305 = vmatpush1.msra.mxu0 0.0
    %306 = vmatprep.subr.mxu0 0.0
    %307 = vmatpush1.msra.mxu0 0.0
    %308 = vmatprep.subr.mxu0 0.0
    %309 = vmatpush1.msra.mxu0 0.0
    %310 = vmatprep.subr.mxu0 0.0
    %311 = vmatpush1.msra.mxu0 0.0
    %312 = vmatprep.subr.mxu0 0.0
    %313 = vmatpush1.msra.mxu0 0.0
    %314 = vmatprep.subr.mxu0 0.0
    %315 = vmatpush1.msra.mxu0 0.0
    %316 = vmatprep.subr.mxu0 0.0
    %317 = vmatpush1.msra.mxu0 0.0
    %318 = vmatprep.subr.mxu0 0.0
    %319 = vmatpush1.msra.mxu0 0.0
    %320 = vmatprep.subr.mxu0 0.0
    %321 = vmatpush1.msra.mxu0 0.0
    %322 = vmatprep.mubr.f32.mxu0 0.0
    %v323 = vand.u32 %v70, 4294901760
    %v324 = vsub.f32 %v70, %v323
    %325 = vmatmul.mubr.f32.gmra.mrb[0].mxu0 %v324
    %v326 = vpop.f32.mrb[0].mxu0
    %v327 = vadd.f32 %v245, %v326
    %v328 = vpop.f32.mrb[0].mxu0
    %329 = vdwg.mxu0
    %330 = vmatprep.subr.mxu0 0.0
    %v331 = vand.u32 %v48, 4294901760
    %332 = vmatpush1.msra.mxu0 %v331
    %333 = vmatprep.subr.mxu0 0.0
    %v334 = vand.u32 %v49, 4294901760
    %335 = vmatpush1.msra.mxu0 %v334
    %336 = vmatprep.subr.mxu0 0.0
    %v337 = vand.u32 %v50, 4294901760
    %338 = vmatpush1.msra.mxu0 %v337
    %339 = vmatprep.subr.mxu0 0.0
    %v340 = vand.u32 %v51, 4294901760
    %341 = vmatpush1.msra.mxu0 %v340
    %342 = vmatprep.subr.mxu0 0.0
    %v343 = vand.u32 %v52, 4294901760
    %344 = vmatpush1.msra.mxu0 %v343
    %345 = vmatprep.subr.mxu0 0.0
    %346 = vmatpush1.msra.mxu0 0.0
    %347 = vmatprep.subr.mxu0 0.0
    %348 = vmatpush1.msra.mxu0 0.0
    %349 = vmatprep.subr.mxu0 0.0
    %350 = vmatpush1.msra.mxu0 0.0
    %351 = vmatprep.subr.mxu0 0.0
    %352 = vmatpush1.msra.mxu0 0.0
    %353 = vmatprep.subr.mxu0 0.0
    %354 = vmatpush1.msra.mxu0 0.0
    %355 = vmatprep.subr.mxu0 0.0
    %356 = vmatpush1.msra.mxu0 0.0
    %357 = vmatprep.subr.mxu0 0.0
    %358 = vmatpush1.msra.mxu0 0.0
    %359 = vmatprep.subr.mxu0 0.0
    %360 = vmatpush1.msra.mxu0 0.0
    %361 = vmatprep.subr.mxu0 0.0
    %362 = vmatpush1.msra.mxu0 0.0
    %363 = vmatprep.subr.mxu0 0.0
    %364 = vmatpush1.msra.mxu0 0.0
    %365 = vmatprep.subr.mxu0 0.0
    %366 = vmatpush1.msra.mxu0 0.0
    %367 = vmatprep.subr.mxu0 0.0
    %368 = vmatpush1.msra.mxu0 0.0
    %369 = vmatprep.subr.mxu0 0.0
    %370 = vmatpush1.msra.mxu0 0.0
    %371 = vmatprep.subr.mxu0 0.0
    %372 = vmatpush1.msra.mxu0 0.0
    %373 = vmatprep.subr.mxu0 0.0
    %374 = vmatpush1.msra.mxu0 0.0
    %375 = vmatprep.subr.mxu0 0.0
    %376 = vmatpush1.msra.mxu0 0.0
    %377 = vmatprep.subr.mxu0 0.0
    %378 = vmatpush1.msra.mxu0 0.0
    %379 = vmatprep.subr.mxu0 0.0
    %380 = vmatpush1.msra.mxu0 0.0
    %381 = vmatprep.subr.mxu0 0.0
    %382 = vmatpush1.msra.mxu0 0.0
    %383 = vmatprep.subr.mxu0 0.0
    %384 = vmatpush1.msra.mxu0 0.0
    %385 = vmatprep.subr.mxu0 0.0
    %386 = vmatpush1.msra.mxu0 0.0
    %387 = vmatprep.subr.mxu0 0.0
    %388 = vmatpush1.msra.mxu0 0.0
    %389 = vmatprep.subr.mxu0 0.0
    %390 = vmatpush1.msra.mxu0 0.0
    %391 = vmatprep.subr.mxu0 0.0
    %392 = vmatpush1.msra.mxu0 0.0
    %393 = vmatprep.subr.mxu0 0.0
    %394 = vmatpush1.msra.mxu0 0.0
    %395 = vmatprep.subr.mxu0 0.0
    %396 = vmatpush1.msra.mxu0 0.0
    %397 = vmatprep.subr.mxu0 0.0
    %398 = vmatpush1.msra.mxu0 0.0
    %399 = vmatprep.mubr.f32.mxu0 0.0
    %v400 = vand.u32 %v70, 4294901760
    %v401 = vsub.f32 %v70, %v400
    %v402 = vand.u32 %v401, 4294901760
    %403 = vmatmul.mubr.f32.gmra.mrb[0].mxu0 %v402
    %v404 = vpop.f32.mrb[0].mxu0
    %v405 = vadd.f32 %v327, %v404
    %v406 = vpop.f32.mrb[0].mxu0
    %407 = vdwg.mxu0
    %408 = vmatprep.subr.mxu0 0.0
    %v409 = vand.u32 %v48, 4294901760
    %v410 = vsub.f32 %v48, %v409
    %v411 = vand.u32 %v410, 4294901760
    %412 = vmatpush1.msra.mxu0 %v411
    %413 = vmatprep.subr.mxu0 0.0
    %v414 = vand.u32 %v49, 4294901760
    %v415 = vsub.f32 %v49, %v414
    %v416 = vand.u32 %v415, 4294901760
    %417 = vmatpush1.msra.mxu0 %v416
    %418 = vmatprep.subr.mxu0 0.0
    %v419 = vand.u32 %v50, 4294901760
    %v420 = vsub.f32 %v50, %v419
    %v421 = vand.u32 %v420, 4294901760
    %422 = vmatpush1.msra.mxu0 %v421
    %423 = vmatprep.subr.mxu0 0.0
    %v424 = vand.u32 %v51, 4294901760
    %v425 = vsub.f32 %v51, %v424
    %v426 = vand.u32 %v425, 4294901760
    %427 = vmatpush1.msra.mxu0 %v426
    %428 = vmatprep.subr.mxu0 0.0
    %v429 = vand.u32 %v52, 4294901760
    %v430 = vsub.f32 %v52, %v429
    %v431 = vand.u32 %v430, 4294901760
    %432 = vmatpush1.msra.mxu0 %v431
    %433 = vmatprep.subr.mxu0 0.0
    %434 = vmatpush1.msra.mxu0 0.0
    %435 = vmatprep.subr.mxu0 0.0
    %436 = vmatpush1.msra.mxu0 0.0
    %437 = vmatprep.subr.mxu0 0.0
    %438 = vmatpush1.msra.mxu0 0.0
    %439 = vmatprep.subr.mxu0 0.0
    %440 = vmatpush1.msra.mxu0 0.0
    %441 = vmatprep.subr.mxu0 0.0
    %442 = vmatpush1.msra.mxu0 0.0
    %443 = vmatprep.subr.mxu0 0.0
    %444 = vmatpush1.msra.mxu0 0.0
    %445 = vmatprep.subr.mxu0 0.0
    %446 = vmatpush1.msra.mxu0 0.0
    %447 = vmatprep.subr.mxu0 0.0
    %448 = vmatpush1.msra.mxu0 0.0
    %449 = vmatprep.subr.mxu0 0.0
    %450 = vmatpush1.msra.mxu0 0.0
    %451 = vmatprep.subr.mxu0 0.0
    %452 = vmatpush1.msra.mxu0 0.0
    %453 = vmatprep.subr.mxu0 0.0
    %454 = vmatpush1.msra.mxu0 0.0
    %455 = vmatprep.subr.mxu0 0.0
    %456 = vmatpush1.msra.mxu0 0.0
    %457 = vmatprep.subr.mxu0 0.0
    %458 = vmatpush1.msra.mxu0 0.0
    %459 = vmatprep.subr.mxu0 0.0
    %460 = vmatpush1.msra.mxu0 0.0
    %461 = vmatprep.subr.mxu0 0.0
    %462 = vmatpush1.msra.mxu0 0.0
    %463 = vmatprep.subr.mxu0 0.0
    %464 = vmatpush1.msra.mxu0 0.0
    %465 = vmatprep.subr.mxu0 0.0
    %466 = vmatpush1.msra.mxu0 0.0
    %467 = vmatprep.subr.mxu0 0.0
    %468 = vmatpush1.msra.mxu0 0.0
    %469 = vmatprep.subr.mxu0 0.0
    %470 = vmatpush1.msra.mxu0 0.0
    %471 = vmatprep.subr.mxu0 0.0
    %472 = vmatpush1.msra.mxu0 0.0
    %473 = vmatprep.subr.mxu0 0.0
    %474 = vmatpush1.msra.mxu0 0.0
    %475 = vmatprep.subr.mxu0 0.0
    %476 = vmatpush1.msra.mxu0 0.0
    %477 = vmatprep.subr.mxu0 0.0
    %478 = vmatpush1.msra.mxu0 0.0
    %479 = vmatprep.subr.mxu0 0.0
    %480 = vmatpush1.msra.mxu0 0.0
    %481 = vmatprep.subr.mxu0 0.0
    %482 = vmatpush1.msra.mxu0 0.0
    %483 = vmatprep.subr.mxu0 0.0
    %484 = vmatpush1.msra.mxu0 0.0
    %485 = vmatprep.subr.mxu0 0.0
    %486 = vmatpush1.msra.mxu0 0.0
    %487 = vmatprep.mubr.f32.mxu0 0.0
    %v488 = vand.u32 %v70, 4294901760
    %489 = vmatmul.mubr.f32.gmra.mrb[0].mxu0 %v488
    %v490 = vpop.f32.mrb[0].mxu0
    %v491 = vadd.f32 %v405, %v490
    %v492 = vpop.f32.mrb[0].mxu0
    %493 = vdwg.mxu0
    %494 = vmatprep.subr.mxu0 0.0
    %v495 = vand.u32 %v48, 4294901760
    %496 = vmatpush1.msra.mxu0 %v495
    %497 = vmatprep.subr.mxu0 0.0
    %v498 = vand.u32 %v49, 4294901760
    %499 = vmatpush1.msra.mxu0 %v498
    %500 = vmatprep.subr.mxu0 0.0
    %v501 = vand.u32 %v50, 4294901760
    %502 = vmatpush1.msra.mxu0 %v501
    %503 = vmatprep.subr.mxu0 0.0
    %v504 = vand.u32 %v51, 4294901760
    %505 = vmatpush1.msra.mxu0 %v504
    %506 = vmatprep.subr.mxu0 0.0
    %v507 = vand.u32 %v52, 4294901760
    %508 = vmatpush1.msra.mxu0 %v507
    %509 = vmatprep.subr.mxu0 0.0
    %510 = vmatpush1.msra.mxu0 0.0
    %511 = vmatprep.subr.mxu0 0.0
    %512 = vmatpush1.msra.mxu0 0.0
    %513 = vmatprep.subr.mxu0 0.0
    %514 = vmatpush1.msra.mxu0 0.0
    %515 = vmatprep.subr.mxu0 0.0
    %516 = vmatpush1.msra.mxu0 0.0
    %517 = vmatprep.subr.mxu0 0.0
    %518 = vmatpush1.msra.mxu0 0.0
    %519 = vmatprep.subr.mxu0 0.0
    %520 = vmatpush1.msra.mxu0 0.0
    %521 = vmatprep.subr.mxu0 0.0
    %522 = vmatpush1.msra.mxu0 0.0
    %523 = vmatprep.subr.mxu0 0.0
    %524 = vmatpush1.msra.mxu0 0.0
    %525 = vmatprep.subr.mxu0 0.0
    %526 = vmatpush1.msra.mxu0 0.0
    %527 = vmatprep.subr.mxu0 0.0
    %528 = vmatpush1.msra.mxu0 0.0
    %529 = vmatprep.subr.mxu0 0.0
    %530 = vmatpush1.msra.mxu0 0.0
    %531 = vmatprep.subr.mxu0 0.0
    %532 = vmatpush1.msra.mxu0 0.0
    %533 = vmatprep.subr.mxu0 0.0
    %534 = vmatpush1.msra.mxu0 0.0
    %535 = vmatprep.subr.mxu0 0.0
    %536 = vmatpush1.msra.mxu0 0.0
    %537 = vmatprep.subr.mxu0 0.0
    %538 = vmatpush1.msra.mxu0 0.0
    %539 = vmatprep.subr.mxu0 0.0
    %540 = vmatpush1.msra.mxu0 0.0
    %541 = vmatprep.subr.mxu0 0.0
    %542 = vmatpush1.msra.mxu0 0.0
    %543 = vmatprep.subr.mxu0 0.0
    %544 = vmatpush1.msra.mxu0 0.0
    %545 = vmatprep.subr.mxu0 0.0
    %546 = vmatpush1.msra.mxu0 0.0
    %547 = vmatprep.subr.mxu0 0.0
    %548 = vmatpush1.msra.mxu0 0.0
    %549 = vmatprep.subr.mxu0 0.0
    %550 = vmatpush1.msra.mxu0 0.0
    %551 = vmatprep.subr.mxu0 0.0
    %552 = vmatpush1.msra.mxu0 0.0
    %553 = vmatprep.subr.mxu0 0.0
    %554 = vmatpush1.msra.mxu0 0.0
    %555 = vmatprep.subr.mxu0 0.0
    %556 = vmatpush1.msra.mxu0 0.0
    %557 = vmatprep.subr.mxu0 0.0
    %558 = vmatpush1.msra.mxu0 0.0
    %559 = vmatprep.subr.mxu0 0.0
    %560 = vmatpush1.msra.mxu0 0.0
    %561 = vmatprep.subr.mxu0 0.0
    %562 = vmatpush1.msra.mxu0 0.0
    %563 = vmatprep.mubr.f32.mxu0 0.0
    %v564 = vand.u32 %v70, 4294901760
    %565 = vmatmul.mubr.f32.gmra.mrb[0].mxu0 %v564
    %v566 = vpop.f32.mrb[0].mxu0
    %v567 = vadd.f32 %v491, %v566
    %v568 = vpop.f32.mrb[0].mxu0
    %569 = vdwg.mxu0
    %570 = vst [vmem:[#allocation7] sm:$0xff] %v567
    %s571 = smul.u32 0, 2
    %s572 = sadd.s32 %s571, 1
    %s573 = smul.u32 %s572, 4
    %v574 = vstv %s573
    %v575 = vsub.s32 %v574, %v45
    %vm576 = vcmp.ge.s32.totalorder %v575, %v59
    %vm577 = vcmp.le.s32.totalorder %v575, %v64
    %vm578 = vmand %vm576, %vm577
    %v579 = vsel %vm578, 1.0, 0.0
    %v581 = vsel %vm68, %v579, 0
    %583 = vmatprep.subr.mxu0 0.0
    %v584 = vand.u32 %v48, 4294901760
    %585 = vmatpush1.msra.mxu0 %v584
    %586 = vmatprep.subr.mxu0 0.0
    %v587 = vand.u32 %v49, 4294901760
    %588 = vmatpush1.msra.mxu0 %v587
    %589 = vmatprep.subr.mxu0 0.0
    %v590 = vand.u32 %v50, 4294901760
    %591 = vmatpush1.msra.mxu0 %v590
    %592 = vmatprep.subr.mxu0 0.0
    %v593 = vand.u32 %v51, 4294901760
    %594 = vmatpush1.msra.mxu0 %v593
    %595 = vmatprep.subr.mxu0 0.0
    %v596 = vand.u32 %v52, 4294901760
    %597 = vmatpush1.msra.mxu0 %v596
    %598 = vmatprep.subr.mxu0 0.0
    %599 = vmatpush1.msra.mxu0 0.0
    %600 = vmatprep.subr.mxu0 0.0
    %601 = vmatpush1.msra.mxu0 0.0
    %602 = vmatprep.subr.mxu0 0.0
    %603 = vmatpush1.msra.mxu0 0.0
    %604 = vmatprep.subr.mxu0 0.0
    %605 = vmatpush1.msra.mxu0 0.0
    %606 = vmatprep.subr.mxu0 0.0
    %607 = vmatpush1.msra.mxu0 0.0
    %608 = vmatprep.subr.mxu0 0.0
    %609 = vmatpush1.msra.mxu0 0.0
    %610 = vmatprep.subr.mxu0 0.0
    %611 = vmatpush1.msra.mxu0 0.0
    %612 = vmatprep.subr.mxu0 0.0
    %613 = vmatpush1.msra.mxu0 0.0
    %614 = vmatprep.subr.mxu0 0.0
    %615 = vmatpush1.msra.mxu0 0.0
    %616 = vmatprep.subr.mxu0 0.0
    %617 = vmatpush1.msra.mxu0 0.0
    %618 = vmatprep.subr.mxu0 0.0
    %619 = vmatpush1.msra.mxu0 0.0
    %620 = vmatprep.subr.mxu0 0.0
    %621 = vmatpush1.msra.mxu0 0.0
    %622 = vmatprep.subr.mxu0 0.0
    %623 = vmatpush1.msra.mxu0 0.0
    %624 = vmatprep.subr.mxu0 0.0
    %625 = vmatpush1.msra.mxu0 0.0
    %626 = vmatprep.subr.mxu0 0.0
    %627 = vmatpush1.msra.mxu0 0.0
    %628 = vmatprep.subr.mxu0 0.0
    %629 = vmatpush1.msra.mxu0 0.0
    %630 = vmatprep.subr.mxu0 0.0
    %631 = vmatpush1.msra.mxu0 0.0
    %632 = vmatprep.subr.mxu0 0.0
    %633 = vmatpush1.msra.mxu0 0.0
    %634 = vmatprep.subr.mxu0 0.0
    %635 = vmatpush1.msra.mxu0 0.0
    %636 = vmatprep.subr.mxu0 0.0
    %637 = vmatpush1.msra.mxu0 0.0
    %638 = vmatprep.subr.mxu0 0.0
    %639 = vmatpush1.msra.mxu0 0.0
    %640 = vmatprep.subr.mxu0 0.0
    %641 = vmatpush1.msra.mxu0 0.0
    %642 = vmatprep.subr.mxu0 0.0
    %643 = vmatpush1.msra.mxu0 0.0
    %644 = vmatprep.subr.mxu0 0.0
    %645 = vmatpush1.msra.mxu0 0.0
    %646 = vmatprep.subr.mxu0 0.0
    %647 = vmatpush1.msra.mxu0 0.0
    %648 = vmatprep.subr.mxu0 0.0
    %649 = vmatpush1.msra.mxu0 0.0
    %650 = vmatprep.subr.mxu0 0.0
    %651 = vmatpush1.msra.mxu0 0.0
    %652 = vmatprep.mubr.f32.mxu0 0.0
    %v653 = vand.u32 %v581, 4294901760
    %v654 = vsub.f32 %v581, %v653
    %v655 = vand.u32 %v654, 4294901760
    %v656 = vsub.f32 %v654, %v655
    %v657 = vand.u32 %v656, 4294901760
    %658 = vmatmul.mubr.f32.gmra.mrb[0].mxu0 %v657
    %v659 = vpop.f32.mrb[0].mxu0
    %v660 = vadd.f32 0.0, %v659
    %v661 = vpop.f32.mrb[0].mxu0
    %662 = vdwg.mxu0
    %663 = vmatprep.subr.mxu0 0.0
    %v664 = vand.u32 %v48, 4294901760
    %v665 = vsub.f32 %v48, %v664
    %v666 = vand.u32 %v665, 4294901760
    %v667 = vsub.f32 %v665, %v666
    %v668 = vand.u32 %v667, 4294901760
    %669 = vmatpush1.msra.mxu0 %v668
    %670 = vmatprep.subr.mxu0 0.0
    %v671 = vand.u32 %v49, 4294901760
    %v672 = vsub.f32 %v49, %v671
    %v673 = vand.u32 %v672, 4294901760
    %v674 = vsub.f32 %v672, %v673
    %v675 = vand.u32 %v674, 4294901760
    %676 = vmatpush1.msra.mxu0 %v675
    %677 = vmatprep.subr.mxu0 0.0
    %v678 = vand.u32 %v50, 4294901760
    %v679 = vsub.f32 %v50, %v678
    %v680 = vand.u32 %v679, 4294901760
    %v681 = vsub.f32 %v679, %v680
    %v682 = vand.u32 %v681, 4294901760
    %683 = vmatpush1.msra.mxu0 %v682
    %684 = vmatprep.subr.mxu0 0.0
    %v685 = vand.u32 %v51, 4294901760
    %v686 = vsub.f32 %v51, %v685
    %v687 = vand.u32 %v686, 4294901760
    %v688 = vsub.f32 %v686, %v687
    %v689 = vand.u32 %v688, 4294901760
    %690 = vmatpush1.msra.mxu0 %v689
    %691 = vmatprep.subr.mxu0 0.0
    %v692 = vand.u32 %v52, 4294901760
    %v693 = vsub.f32 %v52, %v692
    %v694 = vand.u32 %v693, 4294901760
    %v695 = vsub.f32 %v693, %v694
    %v696 = vand.u32 %v695, 4294901760
    %697 = vmatpush1.msra.mxu0 %v696
    %698 = vmatprep.subr.mxu0 0.0
    %699 = vmatpush1.msra.mxu0 0.0
    %700 = vmatprep.subr.mxu0 0.0
    %701 = vmatpush1.msra.mxu0 0.0
    %702 = vmatprep.subr.mxu0 0.0
    %703 = vmatpush1.msra.mxu0 0.0
    %704 = vmatprep.subr.mxu0 0.0
    %705 = vmatpush1.msra.mxu0 0.0
    %706 = vmatprep.subr.mxu0 0.0
    %707 = vmatpush1.msra.mxu0 0.0
    %708 = vmatprep.subr.mxu0 0.0
    %709 = vmatpush1.msra.mxu0 0.0
    %710 = vmatprep.subr.mxu0 0.0
    %711 = vmatpush1.msra.mxu0 0.0
    %712 = vmatprep.subr.mxu0 0.0
    %713 = vmatpush1.msra.mxu0 0.0
    %714 = vmatprep.subr.mxu0 0.0
    %715 = vmatpush1.msra.mxu0 0.0
    %716 = vmatprep.subr.mxu0 0.0
    %717 = vmatpush1.msra.mxu0 0.0
    %718 = vmatprep.subr.mxu0 0.0
    %719 = vmatpush1.msra.mxu0 0.0
    %720 = vmatprep.subr.mxu0 0.0
    %721 = vmatpush1.msra.mxu0 0.0
    %722 = vmatprep.subr.mxu0 0.0
    %723 = vmatpush1.msra.mxu0 0.0
    %724 = vmatprep.subr.mxu0 0.0
    %725 = vmatpush1.msra.mxu0 0.0
    %726 = vmatprep.subr.mxu0 0.0
    %727 = vmatpush1.msra.mxu0 0.0
    %728 = vmatprep.subr.mxu0 0.0
    %729 = vmatpush1.msra.mxu0 0.0
    %730 = vmatprep.subr.mxu0 0.0
    %731 = vmatpush1.msra.mxu0 0.0
    %732 = vmatprep.subr.mxu0 0.0
    %733 = vmatpush1.msra.mxu0 0.0
    %734 = vmatprep.subr.mxu0 0.0
    %735 = vmatpush1.msra.mxu0 0.0
    %736 = vmatprep.subr.mxu0 0.0
    %737 = vmatpush1.msra.mxu0 0.0
    %738 = vmatprep.subr.mxu0 0.0
    %739 = vmatpush1.msra.mxu0 0.0
    %740 = vmatprep.subr.mxu0 0.0
    %741 = vmatpush1.msra.mxu0 0.0
    %742 = vmatprep.subr.mxu0 0.0
    %743 = vmatpush1.msra.mxu0 0.0
    %744 = vmatprep.subr.mxu0 0.0
    %745 = vmatpush1.msra.mxu0 0.0
    %746 = vmatprep.subr.mxu0 0.0
    %747 = vmatpush1.msra.mxu0 0.0
    %748 = vmatprep.subr.mxu0 0.0
    %749 = vmatpush1.msra.mxu0 0.0
    %750 = vmatprep.subr.mxu0 0.0
    %751 = vmatpush1.msra.mxu0 0.0
    %752 = vmatprep.mubr.f32.mxu0 0.0
    %v753 = vand.u32 %v581, 4294901760
    %754 = vmatmul.mubr.f32.gmra.mrb[0].mxu0 %v753
    %v755 = vpop.f32.mrb[0].mxu0
    %v756 = vadd.f32 %v660, %v755
    %v757 = vpop.f32.mrb[0].mxu0
    %758 = vdwg.mxu0
    %759 = vmatprep.subr.mxu0 0.0
    %v760 = vand.u32 %v48, 4294901760
    %v761 = vsub.f32 %v48, %v760
    %762 = vmatpush1.msra.mxu0 %v761
    %763 = vmatprep.subr.mxu0 0.0
    %v764 = vand.u32 %v49, 4294901760
    %v765 = vsub.f32 %v49, %v764
    %766 = vmatpush1.msra.mxu0 %v765
    %767 = vmatprep.subr.mxu0 0.0
    %v768 = vand.u32 %v50, 4294901760
    %v769 = vsub.f32 %v50, %v768
    %770 = vmatpush1.msra.mxu0 %v769
    %771 = vmatprep.subr.mxu0 0.0
    %v772 = vand.u32 %v51, 4294901760
    %v773 = vsub.f32 %v51, %v772
    %774 = vmatpush1.msra.mxu0 %v773
    %775 = vmatprep.subr.mxu0 0.0
    %v776 = vand.u32 %v52, 4294901760
    %v777 = vsub.f32 %v52, %v776
    %778 = vmatpush1.msra.mxu0 %v777
    %779 = vmatprep.subr.mxu0 0.0
    %780 = vmatpush1.msra.mxu0 0.0
    %781 = vmatprep.subr.mxu0 0.0
    %782 = vmatpush1.msra.mxu0 0.0
    %783 = vmatprep.subr.mxu0 0.0
    %784 = vmatpush1.msra.mxu0 0.0
    %785 = vmatprep.subr.mxu0 0.0
    %786 = vmatpush1.msra.mxu0 0.0
    %787 = vmatprep.subr.mxu0 0.0
    %788 = vmatpush1.msra.mxu0 0.0
    %789 = vmatprep.subr.mxu0 0.0
    %790 = vmatpush1.msra.mxu0 0.0
    %791 = vmatprep.subr.mxu0 0.0
    %792 = vmatpush1.msra.mxu0 0.0
    %793 = vmatprep.subr.mxu0 0.0
    %794 = vmatpush1.msra.mxu0 0.0
    %795 = vmatprep.subr.mxu0 0.0
    %796 = vmatpush1.msra.mxu0 0.0
    %797 = vmatprep.subr.mxu0 0.0
    %798 = vmatpush1.msra.mxu0 0.0
    %799 = vmatprep.subr.mxu0 0.0
    %800 = vmatpush1.msra.mxu0 0.0
    %801 = vmatprep.subr.mxu0 0.0
    %802 = vmatpush1.msra.mxu0 0.0
    %803 = vmatprep.subr.mxu0 0.0
    %804 = vmatpush1.msra.mxu0 0.0
    %805 = vmatprep.subr.mxu0 0.0
    %806 = vmatpush1.msra.mxu0 0.0
    %807 = vmatprep.subr.mxu0 0.0
    %808 = vmatpush1.msra.mxu0 0.0
    %809 = vmatprep.subr.mxu0 0.0
    %810 = vmatpush1.msra.mxu0 0.0
    %811 = vmatprep.subr.mxu0 0.0
    %812 = vmatpush1.msra.mxu0 0.0
    %813 = vmatprep.subr.mxu0 0.0
    %814 = vmatpush1.msra.mxu0 0.0
    %815 = vmatprep.subr.mxu0 0.0
    %816 = vmatpush1.msra.mxu0 0.0
    %817 = vmatprep.subr.mxu0 0.0
    %818 = vmatpush1.msra.mxu0 0.0
    %819 = vmatprep.subr.mxu0 0.0
    %820 = vmatpush1.msra.mxu0 0.0
    %821 = vmatprep.subr.mxu0 0.0
    %822 = vmatpush1.msra.mxu0 0.0
    %823 = vmatprep.subr.mxu0 0.0
    %824 = vmatpush1.msra.mxu0 0.0
    %825 = vmatprep.subr.mxu0 0.0
    %826 = vmatpush1.msra.mxu0 0.0
    %827 = vmatprep.subr.mxu0 0.0
    %828 = vmatpush1.msra.mxu0 0.0
    %829 = vmatprep.subr.mxu0 0.0
    %830 = vmatpush1.msra.mxu0 0.0
    %831 = vmatprep.subr.mxu0 0.0
    %832 = vmatpush1.msra.mxu0 0.0
    %833 = vmatprep.mubr.f32.mxu0 0.0
    %v834 = vand.u32 %v581, 4294901760
    %v835 = vsub.f32 %v581, %v834
    %836 = vmatmul.mubr.f32.gmra.mrb[0].mxu0 %v835
    %v837 = vpop.f32.mrb[0].mxu0
    %v838 = vadd.f32 %v756, %v837
    %v839 = vpop.f32.mrb[0].mxu0
    %840 = vdwg.mxu0
    %841 = vmatprep.subr.mxu0 0.0
    %v842 = vand.u32 %v48, 4294901760
    %843 = vmatpush1.msra.mxu0 %v842
    %844 = vmatprep.subr.mxu0 0.0
    %v845 = vand.u32 %v49, 4294901760
    %846 = vmatpush1.msra.mxu0 %v845
    %847 = vmatprep.subr.mxu0 0.0
    %v848 = vand.u32 %v50, 4294901760
    %849 = vmatpush1.msra.mxu0 %v848
    %850 = vmatprep.subr.mxu0 0.0
    %v851 = vand.u32 %v51, 4294901760
    %852 = vmatpush1.msra.mxu0 %v851
    %853 = vmatprep.subr.mxu0 0.0
    %v854 = vand.u32 %v52, 4294901760
    %855 = vmatpush1.msra.mxu0 %v854
    %856 = vmatprep.subr.mxu0 0.0
    %857 = vmatpush1.msra.mxu0 0.0
    %858 = vmatprep.subr.mxu0 0.0
    %859 = vmatpush1.msra.mxu0 0.0
    %860 = vmatprep.subr.mxu0 0.0
    %861 = vmatpush1.msra.mxu0 0.0
    %862 = vmatprep.subr.mxu0 0.0
    %863 = vmatpush1.msra.mxu0 0.0
    %864 = vmatprep.subr.mxu0 0.0
    %865 = vmatpush1.msra.mxu0 0.0
    %866 = vmatprep.subr.mxu0 0.0
    %867 = vmatpush1.msra.mxu0 0.0
    %868 = vmatprep.subr.mxu0 0.0
    %869 = vmatpush1.msra.mxu0 0.0
    %870 = vmatprep.subr.mxu0 0.0
    %871 = vmatpush1.msra.mxu0 0.0
    %872 = vmatprep.subr.mxu0 0.0
    %873 = vmatpush1.msra.mxu0 0.0
    %874 = vmatprep.subr.mxu0 0.0
    %875 = vmatpush1.msra.mxu0 0.0
    %876 = vmatprep.subr.mxu0 0.0
    %877 = vmatpush1.msra.mxu0 0.0
    %878 = vmatprep.subr.mxu0 0.0
    %879 = vmatpush1.msra.mxu0 0.0
    %880 = vmatprep.subr.mxu0 0.0
    %881 = vmatpush1.msra.mxu0 0.0
    %882 = vmatprep.subr.mxu0 0.0
    %883 = vmatpush1.msra.mxu0 0.0
    %884 = vmatprep.subr.mxu0 0.0
    %885 = vmatpush1.msra.mxu0 0.0
    %886 = vmatprep.subr.mxu0 0.0
    %887 = vmatpush1.msra.mxu0 0.0
    %888 = vmatprep.subr.mxu0 0.0
    %889 = vmatpush1.msra.mxu0 0.0
    %890 = vmatprep.subr.mxu0 0.0
    %891 = vmatpush1.msra.mxu0 0.0
    %892 = vmatprep.subr.mxu0 0.0
    %893 = vmatpush1.msra.mxu0 0.0
    %894 = vmatprep.subr.mxu0 0.0
    %895 = vmatpush1.msra.mxu0 0.0
    %896 = vmatprep.subr.mxu0 0.0
    %897 = vmatpush1.msra.mxu0 0.0
    %898 = vmatprep.subr.mxu0 0.0
    %899 = vmatpush1.msra.mxu0 0.0
    %900 = vmatprep.subr.mxu0 0.0
    %901 = vmatpush1.msra.mxu0 0.0
    %902 = vmatprep.subr.mxu0 0.0
    %903 = vmatpush1.msra.mxu0 0.0
    %904 = vmatprep.subr.mxu0 0.0
    %905 = vmatpush1.msra.mxu0 0.0
    %906 = vmatprep.subr.mxu0 0.0
    %907 = vmatpush1.msra.mxu0 0.0
    %908 = vmatprep.subr.mxu0 0.0
    %909 = vmatpush1.msra.mxu0 0.0
    %910 = vmatprep.mubr.f32.mxu0 0.0
    %v911 = vand.u32 %v581, 4294901760
    %v912 = vsub.f32 %v581, %v911
    %v913 = vand.u32 %v912, 4294901760
    %914 = vmatmul.mubr.f32.gmra.mrb[0].mxu0 %v913
    %v915 = vpop.f32.mrb[0].mxu0
    %v916 = vadd.f32 %v838, %v915
    %v917 = vpop.f32.mrb[0].mxu0
    %918 = vdwg.mxu0
    %919 = vmatprep.subr.mxu0 0.0
    %v920 = vand.u32 %v48, 4294901760
    %v921 = vsub.f32 %v48, %v920
    %v922 = vand.u32 %v921, 4294901760
    %923 = vmatpush1.msra.mxu0 %v922
    %924 = vmatprep.subr.mxu0 0.0
    %v925 = vand.u32 %v49, 4294901760
    %v926 = vsub.f32 %v49, %v925
    %v927 = vand.u32 %v926, 4294901760
    %928 = vmatpush1.msra.mxu0 %v927
    %929 = vmatprep.subr.mxu0 0.0
    %v930 = vand.u32 %v50, 4294901760
    %v931 = vsub.f32 %v50, %v930
    %v932 = vand.u32 %v931, 4294901760
    %933 = vmatpush1.msra.mxu0 %v932
    %934 = vmatprep.subr.mxu0 0.0
    %v935 = vand.u32 %v51, 4294901760
    %v936 = vsub.f32 %v51, %v935
    %v937 = vand.u32 %v936, 4294901760
    %938 = vmatpush1.msra.mxu0 %v937
    %939 = vmatprep.subr.mxu0 0.0
    %v940 = vand.u32 %v52, 4294901760
    %v941 = vsub.f32 %v52, %v940
    %v942 = vand.u32 %v941, 4294901760
    %943 = vmatpush1.msra.mxu0 %v942
    %944 = vmatprep.subr.mxu0 0.0
    %945 = vmatpush1.msra.mxu0 0.0
    %946 = vmatprep.subr.mxu0 0.0
    %947 = vmatpush1.msra.mxu0 0.0
    %948 = vmatprep.subr.mxu0 0.0
    %949 = vmatpush1.msra.mxu0 0.0
    %950 = vmatprep.subr.mxu0 0.0
    %951 = vmatpush1.msra.mxu0 0.0
    %952 = vmatprep.subr.mxu0 0.0
    %953 = vmatpush1.msra.mxu0 0.0
    %954 = vmatprep.subr.mxu0 0.0
    %955 = vmatpush1.msra.mxu0 0.0
    %956 = vmatprep.subr.mxu0 0.0
    %957 = vmatpush1.msra.mxu0 0.0
    %958 = vmatprep.subr.mxu0 0.0
    %959 = vmatpush1.msra.mxu0 0.0
    %960 = vmatprep.subr.mxu0 0.0
    %961 = vmatpush1.msra.mxu0 0.0
    %962 = vmatprep.subr.mxu0 0.0
    %963 = vmatpush1.msra.mxu0 0.0
    %964 = vmatprep.subr.mxu0 0.0
    %965 = vmatpush1.msra.mxu0 0.0
    %966 = vmatprep.subr.mxu0 0.0
    %967 = vmatpush1.msra.mxu0 0.0
    %968 = vmatprep.subr.mxu0 0.0
    %969 = vmatpush1.msra.mxu0 0.0
    %970 = vmatprep.subr.mxu0 0.0
    %971 = vmatpush1.msra.mxu0 0.0
    %972 = vmatprep.subr.mxu0 0.0
    %973 = vmatpush1.msra.mxu0 0.0
    %974 = vmatprep.subr.mxu0 0.0
    %975 = vmatpush1.msra.mxu0 0.0
    %976 = vmatprep.subr.mxu0 0.0
    %977 = vmatpush1.msra.mxu0 0.0
    %978 = vmatprep.subr.mxu0 0.0
    %979 = vmatpush1.msra.mxu0 0.0
    %980 = vmatprep.subr.mxu0 0.0
    %981 = vmatpush1.msra.mxu0 0.0
    %982 = vmatprep.subr.mxu0 0.0
    %983 = vmatpush1.msra.mxu0 0.0
    %984 = vmatprep.subr.mxu0 0.0
    %985 = vmatpush1.msra.mxu0 0.0
    %986 = vmatprep.subr.mxu0 0.0
    %987 = vmatpush1.msra.mxu0 0.0
    %988 = vmatprep.subr.mxu0 0.0
    %989 = vmatpush1.msra.mxu0 0.0
    %990 = vmatprep.subr.mxu0 0.0
    %991 = vmatpush1.msra.mxu0 0.0
    %992 = vmatprep.subr.mxu0 0.0
    %993 = vmatpush1.msra.mxu0 0.0
    %994 = vmatprep.subr.mxu0 0.0
    %995 = vmatpush1.msra.mxu0 0.0
    %996 = vmatprep.subr.mxu0 0.0
    %997 = vmatpush1.msra.mxu0 0.0
    %998 = vmatprep.mubr.f32.mxu0 0.0
    %v999 = vand.u32 %v581, 4294901760
    %1000 = vmatmul.mubr.f32.gmra.mrb[0].mxu0 %v999
    %v1001 = vpop.f32.mrb[0].mxu0
    %v1002 = vadd.f32 %v916, %v1001
    %v1003 = vpop.f32.mrb[0].mxu0
    %1004 = vdwg.mxu0
    %1005 = vmatprep.subr.mxu0 0.0
    %v1006 = vand.u32 %v48, 4294901760
    %1007 = vmatpush1.msra.mxu0 %v1006
    %1008 = vmatprep.subr.mxu0 0.0
    %v1009 = vand.u32 %v49, 4294901760
    %1010 = vmatpush1.msra.mxu0 %v1009
    %1011 = vmatprep.subr.mxu0 0.0
    %v1012 = vand.u32 %v50, 4294901760
    %1013 = vmatpush1.msra.mxu0 %v1012
    %1014 = vmatprep.subr.mxu0 0.0
    %v1015 = vand.u32 %v51, 4294901760
    %1016 = vmatpush1.msra.mxu0 %v1015
    %1017 = vmatprep.subr.mxu0 0.0
    %v1018 = vand.u32 %v52, 4294901760
    %1019 = vmatpush1.msra.mxu0 %v1018
    %1020 = vmatprep.subr.mxu0 0.0
    %1021 = vmatpush1.msra.mxu0 0.0
    %1022 = vmatprep.subr.mxu0 0.0
    %1023 = vmatpush1.msra.mxu0 0.0
    %1024 = vmatprep.subr.mxu0 0.0
    %1025 = vmatpush1.msra.mxu0 0.0
    %1026 = vmatprep.subr.mxu0 0.0
    %1027 = vmatpush1.msra.mxu0 0.0
    %1028 = vmatprep.subr.mxu0 0.0
    %1029 = vmatpush1.msra.mxu0 0.0
    %1030 = vmatprep.subr.mxu0 0.0
    %1031 = vmatpush1.msra.mxu0 0.0
    %1032 = vmatprep.subr.mxu0 0.0
    %1033 = vmatpush1.msra.mxu0 0.0
    %1034 = vmatprep.subr.mxu0 0.0
    %1035 = vmatpush1.msra.mxu0 0.0
    %1036 = vmatprep.subr.mxu0 0.0
    %1037 = vmatpush1.msra.mxu0 0.0
    %1038 = vmatprep.subr.mxu0 0.0
    %1039 = vmatpush1.msra.mxu0 0.0
    %1040 = vmatprep.subr.mxu0 0.0
    %1041 = vmatpush1.msra.mxu0 0.0
    %1042 = vmatprep.subr.mxu0 0.0
    %1043 = vmatpush1.msra.mxu0 0.0
    %1044 = vmatprep.subr.mxu0 0.0
    %1045 = vmatpush1.msra.mxu0 0.0
    %1046 = vmatprep.subr.mxu0 0.0
    %1047 = vmatpush1.msra.mxu0 0.0
    %1048 = vmatprep.subr.mxu0 0.0
    %1049 = vmatpush1.msra.mxu0 0.0
    %1050 = vmatprep.subr.mxu0 0.0
    %1051 = vmatpush1.msra.mxu0 0.0
    %1052 = vmatprep.subr.mxu0 0.0
    %1053 = vmatpush1.msra.mxu0 0.0
    %1054 = vmatprep.subr.mxu0 0.0
    %1055 = vmatpush1.msra.mxu0 0.0
    %1056 = vmatprep.subr.mxu0 0.0
    %1057 = vmatpush1.msra.mxu0 0.0
    %1058 = vmatprep.subr.mxu0 0.0
    %1059 = vmatpush1.msra.mxu0 0.0
    %1060 = vmatprep.subr.mxu0 0.0
    %1061 = vmatpush1.msra.mxu0 0.0
    %1062 = vmatprep.subr.mxu0 0.0
    %1063 = vmatpush1.msra.mxu0 0.0
    %1064 = vmatprep.subr.mxu0 0.0
    %1065 = vmatpush1.msra.mxu0 0.0
    %1066 = vmatprep.subr.mxu0 0.0
    %1067 = vmatpush1.msra.mxu0 0.0
    %1068 = vmatprep.subr.mxu0 0.0
    %1069 = vmatpush1.msra.mxu0 0.0
    %1070 = vmatprep.subr.mxu0 0.0
    %1071 = vmatpush1.msra.mxu0 0.0
    %1072 = vmatprep.subr.mxu0 0.0
    %1073 = vmatpush1.msra.mxu0 0.0
    %1074 = vmatprep.mubr.f32.mxu0 0.0
    %v1075 = vand.u32 %v581, 4294901760
    %1076 = vmatmul.mubr.f32.gmra.mrb[0].mxu0 %v1075
    %v1077 = vpop.f32.mrb[0].mxu0
    %v1078 = vadd.f32 %v1002, %v1077
    %v1079 = vpop.f32.mrb[0].mxu0
    %1080 = vdwg.mxu0
    %1081 = vst [vmem:[#allocation7 + $0x8] sm:$0xff] %v1078
    // Predicated region
    $region22: #{tpu_custom_call.1} parent=1 // pred_check
      _
    $region23: #{tpu_custom_call.1} parent=1 // pred_check_branch
      %1083 = sbr.rel (0) target = $region25
    $region24: #{tpu_custom_call.1} parent=1 // pred_region
      %s1085 = ssub.s32 256, 256
      %1086 = vsyncadd [#allocation4], %s1085
      %s1088 = sshll.u32 [#allocation7], 4
      %s1089 = int_to_ptr.vmem [resolvable:$true] %s1088
      %1091 = dma.vmem_to_hbm [thread:$0]  %s1089, 256, %s3, [#allocation4]
    $region25: #{tpu_custom_call.1} parent=1 // pred_fallthru
      _
    // Predicated region
    $region26: #{tpu_custom_call.1} parent=1 // pred_check
      _
    $region27: #{tpu_custom_call.1} parent=1 // pred_check_branch
      %1093 = sbr.rel (0) target = $region29
    $region28: #{tpu_custom_call.1} parent=1 // pred_region
      %1094 = dma.done [#allocation4], 256
    $region29: #{tpu_custom_call.1} parent=1 // pred_fallthru
      _
    %1095 = vsyncpa [#allocation3], 1
    %1096 = vsyncpa [#allocation6], 1
    %1097 = vsyncpa [#allocation4], 1

</llo_original>
